<compile_context>
chip_gen: v5e
topology: v5e:2x2
jax: 0.10.0
libtpu: 0.0.40
codegen_flags: <defaults>
</compile_context>

<pallas_src>
import functools

import jax
import jax.numpy as jnp
from jax.experimental import pallas as pl
from jax.experimental.pallas import tpu as pltpu


def _round_up(x, m):
    return (x + m - 1) // m * m


# --------------------------------------------------------------------------
# tri=True path: row-wise cosine, per-block masked sum / count partials.
# --------------------------------------------------------------------------
def _diag_cosine_kernel(x1_ref, x2_ref, sum_ref, cnt_ref, *,
                        n_rows, tb, eps, min_val):
    i = pl.program_id(0)

    x1 = x1_ref[...].astype(jnp.float32)
    x2 = x2_ref[...].astype(jnp.float32)

    ip = jnp.sum(x1 * x2, axis=1, keepdims=True)      # (tb, 1)
    n1 = jnp.sum(x1 * x1, axis=1, keepdims=True)      # (tb, 1)
    n2 = jnp.sum(x2 * x2, axis=1, keepdims=True)      # (tb, 1)

    # ip / max(||x1||*||x2||, eps) == ip * rsqrt(max(n1*n2, eps^2))  (EUP slot)
    cos = ip * jax.lax.rsqrt(jnp.maximum(n1 * n2, eps * eps))
    base_keep = cos >= min_val

    def emit(keep):
        # Per-block partial outputs (no cross-step accumulation -> the grid
        # axis can be "parallel" and v7x uses both TensorCores).
        sum_ref[...] = jnp.sum(jnp.where(keep, cos, 0.0), keepdims=True)
        cnt_ref[...] = jnp.sum(keep.astype(jnp.float32), keepdims=True)

    if n_rows % tb == 0:                      # static: no ragged last block
        emit(base_keep)
    else:
        last = pl.num_programs(0) - 1

        @pl.when(i != last)
        def _interior():
            emit(base_keep)

        @pl.when(i == last)
        def _edge():
            row = jax.lax.broadcasted_iota(jnp.int32, cos.shape, 0) + i * tb
            emit(base_keep & (row < n_rows))


def _diag_loss_sums(x1, x2, eps, min_val):
    L, D = x1.shape
    itemsize = x1.dtype.itemsize
    Lr = _round_up(L, 8)

    # HBM-bound stream: ~4 MiB per (tb, D) input tile so per-step overhead and
    # shallow DMA windows don't dominate; 2 inputs x 2 pipeline buffers stay
    # around 16 MiB of VMEM (fits every generation incl. v7x's 64 MiB).
    tb = _round_up(max(8, (4 << 20) // max(1, itemsize * D)), 8)
    tb = min(tb, Lr)
    nblk = pl.cdiv(L, tb)

    kernel = functools.partial(_diag_cosine_kernel, n_rows=L, tb=tb,
                               eps=float(eps), min_val=float(min_val))
    s, c = pl.pallas_call(
        kernel,
        out_shape=(jax.ShapeDtypeStruct((nblk, 1, 1), jnp.float32),
                   jax.ShapeDtypeStruct((nblk, 1, 1), jnp.float32)),
        grid=(nblk,),
        in_specs=[pl.BlockSpec((tb, D), lambda i: (i, 0)),
                  pl.BlockSpec((tb, D), lambda i: (i, 0))],
        out_specs=(pl.BlockSpec((None, 1, 1), lambda i: (i, 0, 0)),
                   pl.BlockSpec((None, 1, 1), lambda i: (i, 0, 0))),
        compiler_params=pltpu.CompilerParams(
            dimension_semantics=("parallel",),
            vmem_limit_bytes=32 * 1024 * 1024),
        cost_estimate=pl.CostEstimate(flops=6 * L * D,
                                      transcendentals=L,
                                      bytes_accessed=itemsize * 2 * L * D + 8 * nblk),
    )(x1, x2)
    return jnp.sum(s), jnp.sum(c)


# --------------------------------------------------------------------------
# tri=False path: full cosine matrix, tiled MXU kernel, per-row-block partials.
# --------------------------------------------------------------------------
def _full_cosine_kernel(x1_ref, x2_ref, n1_ref, n2_ref, sum_ref, cnt_ref, *,
                        n_rows, tb, tc, eps, min_val):
    i = pl.program_id(0)
    j = pl.program_id(1)

    @pl.when(j == 0)
    def _init():
        sum_ref[...] = jnp.zeros_like(sum_ref)
        cnt_ref[...] = jnp.zeros_like(cnt_ref)

    # MXU matmul contracting the feature axis of both operands — no transpose.
    ip = jax.lax.dot_general(
        x1_ref[...], x2_ref[...],
        dimension_numbers=(((1,), (1,)), ((), ())),
        preferred_element_type=jnp.float32)            # (tb, tc)

    # ip / max(||x1||*||x2||, eps) == ip * rsqrt(max(n1*n2, eps^2)).
    # Squared norms are streamed; the rsqrt lands on the EUP instead of a VPU
    # reciprocal.  Identical to torch's clamp-on-the-product up to a few ULPs.
    denom_sq = jnp.maximum(n1_ref[...] * n2_ref[...], eps * eps)   # (tb,1)*(1,tc)
    cos = ip * jax.lax.rsqrt(denom_sq)
    base_keep = cos >= min_val

    def accum(keep):
        sum_ref[...] += jnp.sum(jnp.where(keep, cos, 0.0), keepdims=True)
        cnt_ref[...] += jnp.sum(keep.astype(jnp.float32), keepdims=True)

    need_row = (n_rows % tb) != 0
    need_col = (n_rows % tc) != 0
    if not (need_row or need_col):            # static: grid divides exactly
        accum(base_keep)
    else:
        conds = []
        if need_row:
            conds.append(i == pl.num_programs(0) - 1)
        if need_col:
            conds.append(j == pl.num_programs(1) - 1)
        is_edge = functools.reduce(jnp.logical_or, conds)

        @pl.when(jnp.logical_not(is_edge))
        def _interior():                       # no iota / bounds compares here
            accum(base_keep)

        @pl.when(is_edge)
        def _edge():
            keep = base_keep
            if need_row:
                row = jax.lax.broadcasted_iota(jnp.int32, (tb, tc), 0) + i * tb
                keep = keep & (row < n_rows)
            if need_col:
                col = jax.lax.broadcasted_iota(jnp.int32, (tb, tc), 1) + j * tc
                keep = keep & (col < n_rows)
            accum(keep)


def _full_loss_sums(x1, x2, eps, min_val):
    L, D = x1.shape
    itemsize = x1.dtype.itemsize
    Lr = _round_up(L, 8)

    # Resident x1 tile up to 512 rows, streamed x2 tile up to 256 rows: fills
    # the 256-wide MXU (v6e/v7x) and cuts x2 HBM re-reads 4x vs 128-row tiles.
    tb = min(512, Lr)
    tc = 256 if Lr >= 256 else Lr
    # Keep double-buffered (tb,D)+(tc,D) input tiles within ~24 MiB so the
    # kernel still pipelines inside v7x's 64 MiB VMEM.  Shrink keeps tb a
    # multiple of 8 and tc a multiple of 128 (BlockSpec tiling stays legal).
    budget = 24 << 20
    while 2 * (tb + tc) * D * itemsize > budget and tb > 8:
        tb = max(8, _round_up(tb // 2, 8))
    while 2 * (tb + tc) * D * itemsize > budget and tc > 128:
        tc = max(128, tc // 2)
    # TODO(synk): for extremely large feature dims add a K-split grid axis with
    # an f32 VMEM accumulator instead of shrinking tb/tc further.

    ni = pl.cdiv(L, tb)
    nj = pl.cdiv(L, tc)

    # Hoisted *squared* row norms (sqrt folded into the in-kernel rsqrt).  Only
    # the tiny lane-major n2 vector is padded so its (1, tc) block tiles.
    x1f = x1.astype(jnp.float32)
    x2f = x2.astype(jnp.float32)
    n1 = jnp.sum(x1f * x1f, axis=1, keepdims=True)                   # (L, 1)
    n2 = jnp.sum(x2f * x2f, axis=1)                                  # (L,)
    Lc = nj * tc
    n2 = jnp.pad(n2, (0, Lc - L))[None, :]                           # (1, Lc)

    kernel = functools.partial(_full_cosine_kernel, n_rows=L, tb=tb, tc=tc,
                               eps=float(eps), min_val=float(min_val))
    s, c = pl.pallas_call(
        kernel,
        out_shape=(jax.ShapeDtypeStruct((ni, 1, 1), jnp.float32),
                   jax.ShapeDtypeStruct((ni, 1, 1), jnp.float32)),
        grid=(ni, nj),
        in_specs=[
            pl.BlockSpec((tb, D), lambda i, j: (i, 0)),   # x1 tile resident across j
            pl.BlockSpec((tc, D), lambda i, j: (j, 0)),   # x2 tile streamed (inner axis)
            pl.BlockSpec((tb, 1), lambda i, j: (i, 0)),   # ||x1||^2 column
            pl.BlockSpec((1, tc), lambda i, j: (0, j)),   # ||x2||^2 lane-major row
        ],
        out_specs=(pl.BlockSpec((None, 1, 1), lambda i, j: (i, 0, 0)),
                   pl.BlockSpec((None, 1, 1), lambda i, j: (i, 0, 0))),
        compiler_params=pltpu.CompilerParams(
            dimension_semantics=("parallel", "arbitrary"),  # i across cores, j reduced
            vmem_limit_bytes=40 * 1024 * 1024),
        cost_estimate=pl.CostEstimate(
            flops=2 * L * L * D + 5 * L * L,
            transcendentals=L * L,
            bytes_accessed=itemsize * L * D * (1 + ni) + 8 * L),
    )(x1, x2, n1, n2)
    return jnp.sum(s), jnp.sum(c)


# --------------------------------------------------------------------------
# Module-equivalent wrapper.
# --------------------------------------------------------------------------
def cosine_similarity_loss(a, b, labels, *, dim=1, eps=1e-8, min_val=0.1,
                           average=True, tri=True):
    """Forward pass of CosineSimilarityLoss. Returns a scalar loss."""
    if dim != 1:
        raise NotImplementedError("kernel assumes the norm axis is dim=1")
    lab = labels.reshape(-1).astype(jnp.int32)          # labels.view(-1,1)[:,0]
    # Keep bf16/f32 inputs in their native dtype (bf16 halves HBM bytes and is
    # MXU-native); anything else is upcast to f32.
    compute_dtype = a.dtype if a.dtype in (jnp.float32, jnp.bfloat16) else jnp.float32
    # TODO(synk): fuse this label gather into the kernels (scalar prefetch +
    # per-row manual DMA) so x1/x2 are never materialized in HBM.
    x1 = jnp.take(a, lab, axis=0).astype(compute_dtype)
    x2 = jnp.take(b, lab, axis=0).astype(compute_dtype)

    if tri:
        s, c = _diag_loss_sums(x1, x2, eps, min_val)
    else:
        s, c = _full_loss_sums(x1, x2, eps, min_val)

    if average:
        return s / jnp.maximum(c, 1.0)                  # max(1, len(loss_filt))
    return s


# --------------------------------------------------------------------------
# Plain-JAX reference (mirrors the PyTorch math) and demo.
# --------------------------------------------------------------------------
def _reference(a, b, labels, *, dim=1, eps=1e-8, min_val=0.1,
               average=True, tri=True):
    lab = labels.reshape(-1)
    x1 = jnp.take(a, lab, axis=0).astype(jnp.float32)
    x2 = jnp.take(b, lab, axis=0).astype(jnp.float32)
    ip = jnp.matmul(x1, x2.T, precision=jax.lax.Precision.HIGHEST)
    w1 = jnp.linalg.norm(x1, ord=2, axis=dim)
    w2 = jnp.linalg.norm(x2, ord=2, axis=dim)
    cosine = ip / jnp.maximum(jnp.outer(w1, w2), eps)
    if tri:
        cosine = jnp.diagonal(cosine)
    keep = cosine >= min_val
    total = jnp.sum(jnp.where(keep, cosine, 0.0))
    if average:
        total = total / jnp.maximum(jnp.sum(keep), 1)
    return total


if __name__ == "__main__":
    key = jax.random.PRNGKey(0)
    k_a, k_b, k_l, k_l2 = jax.random.split(key, 4)

    n_rows, feat = 16, 32

    a = jax.random.normal(k_a, (n_rows, feat), dtype=jnp.float32)
    b = jax.random.normal(k_b, (n_rows, feat), dtype=jnp.float32)

    # Case 1: tile-aligned number of pairs (exercises the unmasked fast path).
    labels8 = jax.random.randint(k_l, (8, 1), 0, n_rows, dtype=jnp.int32)
    # Case 2: ragged number of pairs (exercises the pl.when edge-mask path).
    labels11 = jax.random.randint(k_l2, (11, 1), 0, n_rows, dtype=jnp.int32)

    results = []
    for labels in (labels8, labels11):
        loss_tri = cosine_similarity_loss(a, b, labels)             # tri=True (default)
        loss_full = cosine_similarity_loss(a, b, labels, tri=False) # full-matrix path
        jax.block_until_ready((loss_tri, loss_full))
        ref_tri = _reference(a, b, labels, tri=True)
        ref_full = _reference(a, b, labels, tri=False)
        assert jnp.allclose(loss_tri, ref_tri, atol=1e-5, rtol=1e-5), (loss_tri, ref_tri)
        assert jnp.allclose(loss_full, ref_full, atol=1e-5, rtol=1e-5), (loss_full, ref_full)
        results.append((loss_tri, loss_full))

    print("KERNEL_OK")
</pallas_src>

<mosaic_0001>
module attributes {stable_mosaic.version = 11 : i64} {
  func.func @_diag_cosine_kernel(%arg0: i32, %arg1: memref<8x32xf32, #tpu.memory_space<vmem>>, %arg2: memref<8x32xf32, #tpu.memory_space<vmem>>, %arg3: memref<1x1x1xf32, #tpu.memory_space<vmem>>, %arg4: memref<1x1x1xf32, #tpu.memory_space<vmem>>) attributes {dimension_semantics = [#tpu.dimension_semantics<parallel>], iteration_bounds = array<i64: 1>, scalar_prefetch = 0 : i64, scratch_operands = 0 : i64, tpu.core_type = #tpu.core_type<tc>, window_params = [{transform_indices = @transform_0, window_bounds = array<i64: 8, 32>}, {transform_indices = @transform_1, window_bounds = array<i64: 8, 32>}, {transform_indices = @transform_2, window_bounds = array<i64: 1, 1, 1>}, {transform_indices = @transform_3, window_bounds = array<i64: 1, 1, 1>}]} {
    %c0 = arith.constant 0 : index
    %c0_0 = arith.constant 0 : index
    %0 = vector.load %arg1[%c0, %c0_0] : memref<8x32xf32, #tpu.memory_space<vmem>>, vector<8x32xf32>
    %c0_1 = arith.constant 0 : index
    %c0_2 = arith.constant 0 : index
    %1 = vector.load %arg2[%c0_1, %c0_2] : memref<8x32xf32, #tpu.memory_space<vmem>>, vector<8x32xf32>
    %2 = arith.mulf %0, %1 : vector<8x32xf32>
    %cst = arith.constant dense<0.000000e+00> : vector<8xf32>
    %3 = vector.multi_reduction <add>, %2, %cst [1] : vector<8x32xf32> to vector<8xf32>
    %4 = vector.shape_cast %3 : vector<8xf32> to vector<8x1xf32>
    %5 = arith.mulf %0, %0 : vector<8x32xf32>
    %cst_3 = arith.constant dense<0.000000e+00> : vector<8xf32>
    %6 = vector.multi_reduction <add>, %5, %cst_3 [1] : vector<8x32xf32> to vector<8xf32>
    %7 = vector.shape_cast %6 : vector<8xf32> to vector<8x1xf32>
    %8 = arith.mulf %1, %1 : vector<8x32xf32>
    %cst_4 = arith.constant dense<0.000000e+00> : vector<8xf32>
    %9 = vector.multi_reduction <add>, %8, %cst_4 [1] : vector<8x32xf32> to vector<8xf32>
    %10 = vector.shape_cast %9 : vector<8xf32> to vector<8x1xf32>
    %11 = arith.mulf %7, %10 : vector<8x1xf32>
    %cst_5 = arith.constant 1.000000e-16 : f32
    %12 = vector.broadcast %cst_5 : f32 to vector<8x1xf32>
    %13 = arith.maximumf %11, %12 : vector<8x1xf32>
    %14 = math.rsqrt %13 : vector<8x1xf32>
    %15 = arith.mulf %4, %14 : vector<8x1xf32>
    %cst_6 = arith.constant 1.000000e-01 : f32
    %16 = vector.broadcast %cst_6 : f32 to vector<8x1xf32>
    %17 = arith.cmpf oge, %15, %16 : vector<8x1xf32>
    %cst_7 = arith.constant 0.000000e+00 : f32
    %18 = vector.broadcast %cst_7 : f32 to vector<8x1xf32>
    %19 = arith.select %17, %15, %18 : vector<8x1xi1>, vector<8x1xf32>
    %20 = vector.shape_cast %19 : vector<8x1xf32> to vector<1x8x1xf32>
    %cst_8 = arith.constant dense<0.000000e+00> : vector<1xf32>
    %21 = vector.multi_reduction <add>, %20, %cst_8 [1, 2] : vector<1x8x1xf32> to vector<1xf32>
    %22 = vector.shape_cast %21 : vector<1xf32> to vector<1x1x1xf32>
    %23 = vector.extract %22[0, 0, 0] : f32 from vector<1x1x1xf32>
    %24 = vector.broadcast %23 : f32 to vector<1x1xf32>
    %c0_9 = arith.constant 0 : index
    %c0_10 = arith.constant 0 : index
    %c0_11 = arith.constant 0 : index
    %25 = vector.load %arg3[%c0_9, %c0_10, %c0_11] : memref<1x1x1xf32, #tpu.memory_space<vmem>>, vector<1x1x1xf32>
    %26 = vector.shape_cast %25 : vector<1x1x1xf32> to vector<1x1xf32>
    %27 = vector.shape_cast %24 : vector<1x1xf32> to vector<1x1x1xf32>
    tpu.vector_store %arg3[%c0_9, %c0_10, %c0_11], %27 {strides = array<i32>} : memref<1x1x1xf32, #tpu.memory_space<vmem>>, vector<1x1x1xf32>,
    %28 = arith.extui %17 : vector<8x1xi1> to vector<8x1xi32>
    %29 = arith.sitofp %28 : vector<8x1xi32> to vector<8x1xf32>
    %30 = vector.shape_cast %29 : vector<8x1xf32> to vector<1x8x1xf32>
    %cst_12 = arith.constant dense<0.000000e+00> : vector<1xf32>
    %31 = vector.multi_reduction <add>, %30, %cst_12 [1, 2] : vector<1x8x1xf32> to vector<1xf32>
    %32 = vector.shape_cast %31 : vector<1xf32> to vector<1x1x1xf32>
    %33 = vector.extract %32[0, 0, 0] : f32 from vector<1x1x1xf32>
    %34 = vector.broadcast %33 : f32 to vector<1x1xf32>
    %c0_13 = arith.constant 0 : index
    %c0_14 = arith.constant 0 : index
    %c0_15 = arith.constant 0 : index
    %35 = vector.load %arg4[%c0_13, %c0_14, %c0_15] : memref<1x1x1xf32, #tpu.memory_space<vmem>>, vector<1x1x1xf32>
    %36 = vector.shape_cast %35 : vector<1x1x1xf32> to vector<1x1xf32>
    %37 = vector.shape_cast %34 : vector<1x1xf32> to vector<1x1x1xf32>
    tpu.vector_store %arg4[%c0_13, %c0_14, %c0_15], %37 {strides = array<i32>} : memref<1x1x1xf32, #tpu.memory_space<vmem>>, vector<1x1x1xf32>,
    return
  }
  func.func @transform_0(%arg0: i32) -> (i32, i32) {
    %c0_i32 = arith.constant 0 : i32
    %c0_i32_0 = arith.constant 0 : i32
    return %arg0, %c0_i32 : i32, i32
  }
  func.func @transform_1(%arg0: i32) -> (i32, i32) {
    %c0_i32 = arith.constant 0 : i32
    %c0_i32_0 = arith.constant 0 : i32
    return %arg0, %c0_i32 : i32, i32
  }
  func.func @transform_2(%arg0: i32) -> (i32, i32, i32) {
    %c0_i32 = arith.constant 0 : i32
    %c0_i32_0 = arith.constant 0 : i32
    %c0_i32_1 = arith.constant 0 : i32
    return %arg0, %c0_i32, %c0_i32_0 : i32, i32, i32
  }
  func.func @transform_3(%arg0: i32) -> (i32, i32, i32) {
    %c0_i32 = arith.constant 0 : i32
    %c0_i32_0 = arith.constant 0 : i32
    %c0_i32_1 = arith.constant 0 : i32
    return %arg0, %c0_i32, %c0_i32_0 : i32, i32, i32
  }
}

</mosaic_0001>

<llo_original>
// kernel: tpu_custom_call.1
$region0: #{tpu_custom_call.1}
  #allocation0 [shape = 'u32[]', space=smem, size = 0x4, offset = 0x4, fixed_abs, tag = 'smem constant byte address 0x4 - core index']
  #allocation1 [shape = 'u32[72,128]{1,0:T(1,128)}', space=vmem, size = 0x9000, scoped, tag = 'internal scratch']
  %s0 = inlined_call_operand.hbm [shape: f32[8,32], index: 0, kind: input, shape index: {}]
  %s1 = inlined_call_operand.hbm [shape: f32[8,32], index: 1, kind: input, shape index: {}]
  %s2 = inlined_call_operand.hbm [shape: f32[1,1,1], index: 2, kind: output, shape index: {0}]
  %s3 = inlined_call_operand.hbm [shape: f32[1,1,1], index: 3, kind: output, shape index: {1}]
  %4 = xla_tuple %s2, %s3
  %s5 = sld [smem:[#allocation0]]
  $region34: #{tpu_custom_call.1} parent=0
    _
  %s7 = ssub.s32 1, %s5
  %s8 = scalar_select 0, %s7, %s5
  $region1: #{tpu_custom_call.1} parent=0
    #allocation2 [shape = 'u8[4096]{0}', space=vmem, size = 0x1000, scoped, tag = 'input window, operand 0, single buffered']
    #allocation3 [shape = 's32[1]{0}', space=sflag, size = 0x4, scoped, tag = 'scoped memory for tpu_custom_call.1']
    #allocation4 [shape = 's32[1]{0}', space=sflag, size = 0x4, scoped, tag = 'scoped memory for tpu_custom_call.1']
    #allocation5 [shape = 'u8[4096]{0}', space=vmem, size = 0x1000, scoped, tag = 'input window, operand 1, single buffered']
    #allocation6 [shape = 's32[1]{0}', space=sflag, size = 0x4, scoped, tag = 'scoped memory for tpu_custom_call.1']
    #allocation7 [shape = 'u8[512]{0}', space=vmem, size = 0x400, scoped, tag = 'output window, operand 0, single buffered']
    #allocation8 [shape = 'u8[512]{0}', space=vmem, size = 0x400, scoped, tag = 'output window, operand 1, single buffered']
    #allocation9 [shape = 's32[1]{0}', space=sflag, size = 0x4, scoped, tag = 'scoped memory for tpu_custom_call.1']
    %9 = vsyncpa [#allocation3], 0
    %10 = vsyncpa [#allocation6], 0
    %11 = vsyncpa [#allocation4], 0
    %12 = vsyncpa [#allocation9], 0
    // Predicated region
    $region2: #{tpu_custom_call.1} parent=1 // pred_check
      _
    $region3: #{tpu_custom_call.1} parent=1 // pred_check_branch
      %14 = sbr.rel (0) target = $region5
    $region4: #{tpu_custom_call.1} parent=1 // pred_region
      %16 = vsyncadd [#allocation3], 0
      %s18 = sshll.u32 %s0, 4
      %s19 = int_to_ptr.hbm [resolvable:$true] %s18
      %s20 = sshll.u32 [#allocation2], 4
      %s21 = int_to_ptr.vmem [resolvable:$true] %s20
      %23 = dma.hbm_to_vmem [thread:$0]  %s19, 128, %s21, [#allocation3]
    $region5: #{tpu_custom_call.1} parent=1 // pred_fallthru
      _
    // Predicated region
    $region6: #{tpu_custom_call.1} parent=1 // pred_check
      _
    $region7: #{tpu_custom_call.1} parent=1 // pred_check_branch
      %25 = sbr.rel (0) target = $region9
    $region8: #{tpu_custom_call.1} parent=1 // pred_region
      %27 = vsyncadd [#allocation6], 0
      %s29 = sshll.u32 %s1, 4
      %s30 = int_to_ptr.hbm [resolvable:$true] %s29
      %s31 = sshll.u32 [#allocation5], 4
      %s32 = int_to_ptr.vmem [resolvable:$true] %s31
      %34 = dma.hbm_to_vmem [thread:$0]  %s30, 128, %s32, [#allocation6]
    $region9: #{tpu_custom_call.1} parent=1 // pred_fallthru
      _
    // Predicated region
    $region10: #{tpu_custom_call.1} parent=1 // pred_check
      _
    $region11: #{tpu_custom_call.1} parent=1 // pred_check_branch
      %36 = sbr.rel (0) target = $region13
    $region12: #{tpu_custom_call.1} parent=1 // pred_region
      %38 = dma.done [#allocation3], 128
    $region13: #{tpu_custom_call.1} parent=1 // pred_fallthru
      _
    // Predicated region
    $region14: #{tpu_custom_call.1} parent=1 // pred_check
      _
    $region15: #{tpu_custom_call.1} parent=1 // pred_check_branch
      %40 = sbr.rel (0) target = $region17
    $region16: #{tpu_custom_call.1} parent=1 // pred_region
      %42 = dma.done [#allocation6], 128
    $region17: #{tpu_custom_call.1} parent=1 // pred_fallthru
      _
    %v43 = vld [vmem:[#allocation2] sm:$0xff]
    %v44 = vld [vmem:[#allocation5] sm:$0xff]
    %v45 = vmul.f32 %v43, %v44
    %vm46 = vcmask 261120
    %v47 = vsel %vm46, %v45, 0.0
    %48 = vadd.xlane.f32.xlu0 %v47
    %v49 = vpop.xlane.xlu0 %48
    %v50 = vmul.f32 %v43, %v43
    %v51 = vsel %vm46, %v50, 0.0
    %52 = vadd.xlane.f32.xlu0 %v51
    %v53 = vpop.xlane.xlu0 %52
    %v54 = vmul.f32 %v44, %v44
    %v55 = vsel %vm46, %v54, 0.0
    %56 = vadd.xlane.f32.xlu0 %v55
    %v57 = vpop.xlane.xlu0 %56
    %v58 = vmul.f32 %v53, %v57
    %v59 = vmax.f32 %v58, 1e-16
    %v60 = vrsqrt.pop %v59
    %v61 = vmul.f32 %v60, %v59
    %v62 = vmul.f32 %v61, %v60
    %v63 = vmul.f32 0.5, %v62
    %v64 = vsub.f32 1.5, %v63
    %v65 = vmul.f32 %v60, %v64
    %vm66 = vweird.f32 %v59
    %vm67 = vweird.f32 %v60
    %vm68 = vmor %vm66, %vm67
    %v69 = vsel %vm68, %v60, %v65
    %v70 = vmul.f32 %v49, %v69
    %vm71 = vcmp.ge.f32.partialorder %v70, 0.1
    %v72 = vsel %vm71, %v70, 0.0
    %vm73 = vcmask 7168
    %v74 = vsel %vm73, %v72, 0.0
    %75 = vadd.xlane.f32.xlu0 %v74
    %v76 = vpop.xlane.xlu0 %75
    %v77 = vrot.slane %v76, 4
    %v78 = vadd.f32 %v76, %v77
    %v79 = vrot.slane %v78, 2
    %v80 = vadd.f32 %v78, %v79
    %v81 = vrot.slane %v80, 1
    %v82 = vadd.f32 %v80, %v81
    %s83 = vtos %v82
    %v84 = vstv %s83
    %vm85 = vcmask 0
    %86 = vst.msk [vmem:[#allocation7] sm:$0x1] %vm85, %v84
    %v87 = vsel %vm71, 1, 0
    %v88 = vcvt.s32.f32 %v87
    %v89 = vsel %vm73, %v88, 0.0
    %90 = vadd.xlane.f32.xlu0 %v89
    %v91 = vpop.xlane.xlu0 %90
    %v92 = vrot.slane %v91, 4
    %v93 = vadd.f32 %v91, %v92
    %v94 = vrot.slane %v93, 2
    %v95 = vadd.f32 %v93, %v94
    %v96 = vrot.slane %v95, 1
    %v97 = vadd.f32 %v95, %v96
    %s98 = vtos %v97
    %v99 = vstv %s98
    %100 = vst.msk [vmem:[#allocation8] sm:$0x1] %vm85, %v99
    // Predicated region
    $region18: #{tpu_custom_call.1} parent=1 // pred_check
      _
    $region19: #{tpu_custom_call.1} parent=1 // pred_check_branch
      %102 = sbr.rel (0) target = $region21
    $region20: #{tpu_custom_call.1} parent=1 // pred_region
      %104 = vsyncadd [#allocation4], 0
      %s106 = sshll.u32 [#allocation7], 4
      %s107 = int_to_ptr.vmem [resolvable:$true] %s106
      %s108 = sshll.u32 %s2, 4
      %s109 = int_to_ptr.hbm [resolvable:$true] %s108
      %111 = dma.vmem_to_hbm [thread:$0]  %s107, 16, %s109, [#allocation4]
    $region21: #{tpu_custom_call.1} parent=1 // pred_fallthru
      _
    // Predicated region
    $region22: #{tpu_custom_call.1} parent=1 // pred_check
      _
    $region23: #{tpu_custom_call.1} parent=1 // pred_check_branch
      %113 = sbr.rel (0) target = $region25
    $region24: #{tpu_custom_call.1} parent=1 // pred_region
      %115 = vsyncadd [#allocation9], 0
      %s117 = sshll.u32 [#allocation8], 4
      %s118 = int_to_ptr.vmem [resolvable:$true] %s117
      %s119 = sshll.u32 %s3, 4
      %s120 = int_to_ptr.hbm [resolvable:$true] %s119
      %122 = dma.vmem_to_hbm [thread:$0]  %s118, 16, %s120, [#allocation9]
    $region25: #{tpu_custom_call.1} parent=1 // pred_fallthru
      _
    // Predicated region
    $region26: #{tpu_custom_call.1} parent=1 // pred_check
      _
    $region27: #{tpu_custom_call.1} parent=1 // pred_check_branch
      %124 = sbr.rel (0) target = $region29
    $region28: #{tpu_custom_call.1} parent=1 // pred_region
      %126 = dma.done [#allocation4], 16
    $region29: #{tpu_custom_call.1} parent=1 // pred_fallthru
      _
    // Predicated region
    $region30: #{tpu_custom_call.1} parent=1 // pred_check
      _
    $region31: #{tpu_custom_call.1} parent=1 // pred_check_branch
      %128 = sbr.rel (0) target = $region33
    $region32: #{tpu_custom_call.1} parent=1 // pred_region
      %130 = dma.done [#allocation9], 16
    $region33: #{tpu_custom_call.1} parent=1 // pred_fallthru
      _
    %131 = vsyncpa [#allocation3], 1
    %132 = vsyncpa [#allocation6], 1
    %133 = vsyncpa [#allocation4], 1
    %134 = vsyncpa [#allocation9], 1

</llo_original>
